<compile_context>
chip_gen: v6e
topology: v6e:2x2x1
jax: 0.10.0
libtpu: 0.0.40
codegen_flags: <defaults>
</compile_context>

<pallas_src>
import jax
import jax.numpy as jnp
from jax.experimental import pallas as pl
from jax.experimental.pallas import tpu as pltpu

_LANE = 128


def attention_block_kernel(x_ref, w1a_ref, w1b_ref, b1_ref, w2t_ref, b2_ref, o_ref):
    # x_ref: (BN, C, T) tile -- channels on sublanes, spatial pixels on lanes.
    x = x_ref[...]
    xf = x.astype(jnp.float32)

    # Channel-wise pooling (PyTorch: mean/max over dim=1 of NCHW) -> sublane reduce.
    avg = jnp.mean(xf, axis=1, keepdims=True)   # (BN, 1, T)
    mx = jnp.max(xf, axis=1, keepdims=True)     # (BN, 1, T)

    # conv1: 1x1 conv (2 -> C//8).  K=2, so two VPU broadcast FMAs.
    w1a = w1a_ref[...][None, :, :]              # (1, C8, 1)
    w1b = w1b_ref[...][None, :, :]
    b1 = b1_ref[...][None, :, :]
    h = jnp.maximum(w1a * avg + w1b * mx + b1, 0.0)   # (BN, C8, T), ReLU

    w2t = w2t_ref[...]                          # (C, C8), f32
    b2 = b2_ref[...][None, :, :]                # (1, C, 1)
    bn, c8, _ = h.shape

    if c8 <= 8:
        # conv2 as C8 VPU broadcast FMAs (outer-product accumulate): a K<=8
        # matmul would use <4% of the MXU and pay push/pop latency for nothing.
        a = b2
        for k in range(c8):
            a = a + w2t[:, k:k + 1][None, :, :] * h[:, k:k + 1, :]
    else:
        # conv2 on the MXU: (C, C8) @ (C8, T) per sample in the block.
        lhs = w2t
        rhs = h
        if x.dtype == jnp.bfloat16:
            # bf16-native MXU operands; accumulate in f32.
            lhs = lhs.astype(jnp.bfloat16)
            rhs = rhs.astype(jnp.bfloat16)
        outs = [jnp.dot(lhs, rhs[b], preferred_element_type=jnp.float32)
                for b in range(bn)]
        a = (outs[0][None] if bn == 1 else jnp.stack(outs, axis=0)) + b2

    a = jax.nn.sigmoid(a)                       # (BN, C, T), f32

    # Final scale in the input dtype: halves VALU/vreg work for bf16 inputs and
    # avoids materializing a second f32 copy of the tile on the store path.
    o_ref[...] = (x * a.astype(x.dtype)).astype(o_ref.dtype)


def _round_up(v, m):
    return (v + m - 1) // m * m


def _choose_tiling(N, C, HW_pad, elem_bytes, target_bytes):
    """Pick (bn, tile_hw): byte-budgeted, lane-dense, megacore-friendly."""
    # Spatial tile: largest multiple of 128 within the byte budget dividing HW_pad.
    budget_pixels = max(_LANE, (target_bytes // max(1, C * elem_bytes)) // _LANE * _LANE)
    budget_pixels = min(budget_pixels, HW_pad)
    tile_hw = _LANE
    cand = budget_pixels
    while cand >= _LANE:
        if HW_pad % cand == 0:
            tile_hw = cand
            break
        cand -= _LANE

    # Batch blocking: merge samples only when one spatial tile already covers the
    # whole (padded) image; keep at least 2 grid steps so both TCs (v7x) get work.
    bn = 1
    if tile_hw == HW_pad and N > 1:
        per_sample = C * HW_pad * elem_bytes
        max_bn = max(1, int(target_bytes // per_sample))
        for cand_bn in range(min(N, max_bn), 0, -1):
            if N % cand_bn == 0 and (N // cand_bn) >= 2:
                bn = cand_bn
                break

    # N == 1, small image: split the image so a "parallel" axis has >= 2 steps.
    if N == 1 and (HW_pad // tile_hw) < 2:
        half = (HW_pad // 2) // _LANE * _LANE
        cand = half
        while cand >= _LANE:
            if HW_pad % cand == 0:
                tile_hw = cand
                break
            cand -= _LANE

    return bn, tile_hw


def attention_block_forward(x_nchw, w1, b1, w2, b2, *, target_tile_bytes=2 * 1024 * 1024):
    """x_nchw: (N, C, H, W). w1: (2, C//8), b1: (C//8,), w2: (C//8, C), b2: (C,)."""
    N, C, H, W = x_nchw.shape
    C8 = w1.shape[1]
    HW = H * W
    elem = jnp.dtype(x_nchw.dtype).itemsize

    # Free reshape: (N, C, H, W) -> (N, C, HW).  Pad the spatial (lane) axis to a
    # multiple of 128 so stores are unmasked / lane-dense; slice it back at the end.
    x_ncp = x_nchw.reshape(N, C, HW)
    HW_pad = _round_up(HW, _LANE)
    if HW_pad != HW:
        x_ncp = jnp.pad(x_ncp, ((0, 0), (0, 0), (0, HW_pad - HW)))

    bn, tile_hw = _choose_tiling(N, C, HW_pad, elem, target_tile_bytes)

    # Small resident parameters, laid out for (C, T) tiles (channels on sublanes).
    w1a = w1[0].reshape(C8, 1).astype(jnp.float32)   # avg-pool weights
    w1b = w1[1].reshape(C8, 1).astype(jnp.float32)   # max-pool weights
    b1c = b1.reshape(C8, 1).astype(jnp.float32)
    w2t = w2.T.astype(jnp.float32)                   # (C, C8)
    b2c = b2.reshape(C, 1).astype(jnp.float32)

    grid = (N // bn, HW_pad // tile_hw)

    # VMEM request: double-buffered in/out tiles + f32 working set, capped at
    # ~75% of the chip's physical per-core VMEM (v7x: 64 MiB, v5e/v6e: 128 MiB).
    try:
        vmem_phys = int(pltpu.get_tpu_info().vmem_capacity_bytes)
    except Exception:
        vmem_phys = 64 * 1024 * 1024                 # conservative (v7x-sized) fallback
    vmem_cap = (vmem_phys * 3) // 4

    tile_elems = bn * C * tile_hw
    io_bytes = 2 * 2 * tile_elems * elem             # double-buffered in + out tiles
    work_bytes = 4 * tile_elems * 4                  # f32 intermediates (xf, h, a, ...)
    vmem_limit = int(min(vmem_cap,
                         max(32 * 1024 * 1024,
                             io_bytes + 2 * work_bytes + (2 << 20))))

    P = N * HW_pad
    cost = pl.CostEstimate(
        flops=2 * P * C * C8 + 6 * P * C,
        transcendentals=P * C,                       # sigmoid
        bytes_accessed=2 * P * C * elem + (2 * C * C8 + 2 * C8 + C) * 4,
    )

    out_ncp = pl.pallas_call(
        attention_block_kernel,
        out_shape=jax.ShapeDtypeStruct((N, C, HW_pad), x_ncp.dtype),
        grid_spec=pltpu.PrefetchScalarGridSpec(
            num_scalar_prefetch=0,
            grid=grid,
            in_specs=[
                pl.BlockSpec((bn, C, tile_hw), lambda n, j: (n, 0, j)),   # x tile
                pl.BlockSpec((C8, 1), lambda n, j: (0, 0)),               # w1 (avg col)
                pl.BlockSpec((C8, 1), lambda n, j: (0, 0)),               # w1 (max col)
                pl.BlockSpec((C8, 1), lambda n, j: (0, 0)),               # b1
                pl.BlockSpec((C, C8), lambda n, j: (0, 0)),               # w2^T
                pl.BlockSpec((C, 1), lambda n, j: (0, 0)),                # b2
            ],
            out_specs=pl.BlockSpec((bn, C, tile_hw), lambda n, j: (n, 0, j)),
            # NOTE: default double-buffering; sweep pipeline_mode=pl.Buffered(3)
            # on the x spec if a profile still shows exposed input DMA.
        ),
        compiler_params=pltpu.CompilerParams(
            dimension_semantics=("parallel", "parallel"),
            vmem_limit_bytes=vmem_limit,
        ),
        cost_estimate=cost,
    )(x_ncp, w1a, w1b, b1c, w2t, b2c)

    if HW_pad != HW:
        out_ncp = out_ncp[:, :, :HW]
    return out_ncp.reshape(N, C, H, W)


def reference_forward(x_nchw, w1, b1, w2, b2):
    """Pure-JAX reference mirroring the PyTorch module."""
    avg_pool = jnp.mean(x_nchw, axis=1, keepdims=True)
    max_pool = jnp.max(x_nchw, axis=1, keepdims=True)
    pool = jnp.concatenate([avg_pool, max_pool], axis=1)      # (N, 2, H, W)
    h = jnp.einsum("nchw,cd->ndhw", pool, w1) + b1[None, :, None, None]
    h = jnp.maximum(h, 0.0)
    a = jnp.einsum("ndhw,dc->nchw", h, w2) + b2[None, :, None, None]
    a = jax.nn.sigmoid(a)
    return x_nchw * a


if __name__ == "__main__":
    # Small shapes consistent with the module: in_channels must be >= 8.
    N, C, H, W = 2, 16, 16, 16
    C8 = C // 8

    key = jax.random.PRNGKey(0)
    kx, kw1, kb1, kw2, kb2 = jax.random.split(key, 5)

    x = jax.random.normal(kx, (N, C, H, W), dtype=jnp.float32)

    # conv1 weight (torch: (C8, 2, 1, 1)) stored as (2, C8);
    # conv2 weight (torch: (C, C8, 1, 1)) stored as (C8, C).
    w1 = jax.random.normal(kw1, (2, C8), dtype=jnp.float32) * 0.5
    b1 = jax.random.normal(kb1, (C8,), dtype=jnp.float32) * 0.1
    w2 = jax.random.normal(kw2, (C8, C), dtype=jnp.float32) * 0.5
    b2 = jax.random.normal(kb2, (C,), dtype=jnp.float32) * 0.1

    out = attention_block_forward(x, w1, b1, w2, b2)
    out = jax.block_until_ready(out)

    ref = reference_forward(x, w1, b1, w2, b2)
    assert out.shape == (N, C, H, W)
    assert jnp.allclose(out, ref, atol=1e-5, rtol=1e-5), "mismatch vs reference"

    print("KERNEL_OK")
</pallas_src>

<mosaic_0001>
module attributes {stable_mosaic.version = 11 : i64} {
  func.func @attention_block_kernel(%arg0: i32, %arg1: i32, %arg2: memref<1x16x256xf32, #tpu.memory_space<vmem>>, %arg3: memref<2x1xf32, #tpu.memory_space<vmem>>, %arg4: memref<2x1xf32, #tpu.memory_space<vmem>>, %arg5: memref<2x1xf32, #tpu.memory_space<vmem>>, %arg6: memref<16x2xf32, #tpu.memory_space<vmem>>, %arg7: memref<16x1xf32, #tpu.memory_space<vmem>>, %arg8: memref<1x16x256xf32, #tpu.memory_space<vmem>>) attributes {dimension_semantics = [#tpu.dimension_semantics<parallel>, #tpu.dimension_semantics<parallel>], iteration_bounds = array<i64: 2, 1>, scalar_prefetch = 0 : i64, scratch_operands = 0 : i64, tpu.core_type = #tpu.core_type<tc>, window_params = [{transform_indices = @transform_0, window_bounds = array<i64: 1, 16, 256>}, {pipeline_mode = #tpu.pipeline_mode<synchronous>, transform_indices = @transform_1, window_bounds = array<i64: 2, 1>}, {pipeline_mode = #tpu.pipeline_mode<synchronous>, transform_indices = @transform_2, window_bounds = array<i64: 2, 1>}, {pipeline_mode = #tpu.pipeline_mode<synchronous>, transform_indices = @transform_3, window_bounds = array<i64: 2, 1>}, {pipeline_mode = #tpu.pipeline_mode<synchronous>, transform_indices = @transform_4, window_bounds = array<i64: 16, 2>}, {pipeline_mode = #tpu.pipeline_mode<synchronous>, transform_indices = @transform_5, window_bounds = array<i64: 16, 1>}, {transform_indices = @transform_6, window_bounds = array<i64: 1, 16, 256>}]} {
    %c0 = arith.constant 0 : index
    %c0_0 = arith.constant 0 : index
    %c0_1 = arith.constant 0 : index
    %0 = vector.load %arg2[%c0, %c0_0, %c0_1] : memref<1x16x256xf32, #tpu.memory_space<vmem>>, vector<1x16x256xf32>
    %cst = arith.constant dense<0.000000e+00> : vector<1x256xf32>
    %1 = vector.multi_reduction <add>, %0, %cst [1] : vector<1x16x256xf32> to vector<1x256xf32>
    %2 = vector.shape_cast %1 : vector<1x256xf32> to vector<1x1x256xf32>
    %cst_2 = arith.constant 1.600000e+01 : f32
    %3 = vector.broadcast %cst_2 : f32 to vector<1x1x256xf32>
    %4 = arith.divf %2, %3 : vector<1x1x256xf32>
    %cst_3 = arith.constant dense<0xFF800000> : vector<1x256xf32>
    %5 = vector.multi_reduction <maximumf>, %0, %cst_3 [1] : vector<1x16x256xf32> to vector<1x256xf32>
    %6 = vector.shape_cast %5 : vector<1x256xf32> to vector<1x1x256xf32>
    %c0_4 = arith.constant 0 : index
    %c0_5 = arith.constant 0 : index
    %7 = vector.load %arg3[%c0_4, %c0_5] : memref<2x1xf32, #tpu.memory_space<vmem>>, vector<2x1xf32>
    %8 = vector.shape_cast %7 : vector<2x1xf32> to vector<1x2x1xf32>
    %c0_6 = arith.constant 0 : index
    %c0_7 = arith.constant 0 : index
    %9 = vector.load %arg4[%c0_6, %c0_7] : memref<2x1xf32, #tpu.memory_space<vmem>>, vector<2x1xf32>
    %10 = vector.shape_cast %9 : vector<2x1xf32> to vector<1x2x1xf32>
    %c0_8 = arith.constant 0 : index
    %c0_9 = arith.constant 0 : index
    %11 = vector.load %arg5[%c0_8, %c0_9] : memref<2x1xf32, #tpu.memory_space<vmem>>, vector<2x1xf32>
    %12 = vector.shape_cast %11 : vector<2x1xf32> to vector<1x2x1xf32>
    %13 = vector.broadcast %8 : vector<1x2x1xf32> to vector<1x2x256xf32>
    %14 = vector.broadcast %4 : vector<1x1x256xf32> to vector<1x2x256xf32>
    %15 = arith.mulf %13, %14 : vector<1x2x256xf32>
    %16 = vector.broadcast %10 : vector<1x2x1xf32> to vector<1x2x256xf32>
    %17 = vector.broadcast %6 : vector<1x1x256xf32> to vector<1x2x256xf32>
    %18 = arith.mulf %16, %17 : vector<1x2x256xf32>
    %19 = arith.addf %15, %18 : vector<1x2x256xf32>
    %20 = vector.broadcast %12 : vector<1x2x1xf32> to vector<1x2x256xf32>
    %21 = arith.addf %19, %20 : vector<1x2x256xf32>
    %cst_10 = arith.constant 0.000000e+00 : f32
    %22 = vector.broadcast %cst_10 : f32 to vector<1x2x256xf32>
    %23 = arith.maximumf %21, %22 : vector<1x2x256xf32>
    %c0_11 = arith.constant 0 : index
    %c0_12 = arith.constant 0 : index
    %24 = vector.load %arg6[%c0_11, %c0_12] : memref<16x2xf32, #tpu.memory_space<vmem>>, vector<16x2xf32>
    %c0_13 = arith.constant 0 : index
    %c0_14 = arith.constant 0 : index
    %25 = vector.load %arg7[%c0_13, %c0_14] : memref<16x1xf32, #tpu.memory_space<vmem>>, vector<16x1xf32>
    %26 = vector.shape_cast %25 : vector<16x1xf32> to vector<1x16x1xf32>
    %27 = vector.extract_strided_slice %24 {offsets = [0, 0], sizes = [16, 1], strides = [1, 1]} : vector<16x2xf32> to vector<16x1xf32>
    %28 = vector.shape_cast %27 : vector<16x1xf32> to vector<1x16x1xf32>
    %29 = vector.extract_strided_slice %23 {offsets = [0, 0, 0], sizes = [1, 1, 256], strides = [1, 1, 1]} : vector<1x2x256xf32> to vector<1x1x256xf32>
    %30 = vector.broadcast %28 : vector<1x16x1xf32> to vector<1x16x256xf32>
    %31 = vector.broadcast %29 : vector<1x1x256xf32> to vector<1x16x256xf32>
    %32 = arith.mulf %30, %31 : vector<1x16x256xf32>
    %33 = vector.broadcast %26 : vector<1x16x1xf32> to vector<1x16x256xf32>
    %34 = arith.addf %33, %32 : vector<1x16x256xf32>
    %35 = vector.extract_strided_slice %24 {offsets = [0, 1], sizes = [16, 1], strides = [1, 1]} : vector<16x2xf32> to vector<16x1xf32>
    %36 = vector.shape_cast %35 : vector<16x1xf32> to vector<1x16x1xf32>
    %37 = vector.extract_strided_slice %23 {offsets = [0, 1, 0], sizes = [1, 1, 256], strides = [1, 1, 1]} : vector<1x2x256xf32> to vector<1x1x256xf32>
    %38 = vector.broadcast %36 : vector<1x16x1xf32> to vector<1x16x256xf32>
    %39 = vector.broadcast %37 : vector<1x1x256xf32> to vector<1x16x256xf32>
    %40 = arith.mulf %38, %39 : vector<1x16x256xf32>
    %41 = arith.addf %34, %40 : vector<1x16x256xf32>
    %42 = arith.negf %41 : vector<1x16x256xf32>
    %43 = math.exp %42 : vector<1x16x256xf32>
    %cst_15 = arith.constant 1.000000e+00 : f32
    %44 = vector.broadcast %cst_15 : f32 to vector<1x16x256xf32>
    %45 = arith.addf %44, %43 : vector<1x16x256xf32>
    %46 = arith.divf %44, %45 : vector<1x16x256xf32>
    %47 = arith.mulf %0, %46 : vector<1x16x256xf32>
    %c0_16 = arith.constant 0 : index
    %c0_17 = arith.constant 0 : index
    %c0_18 = arith.constant 0 : index
    %48 = vector.load %arg8[%c0_16, %c0_17, %c0_18] : memref<1x16x256xf32, #tpu.memory_space<vmem>>, vector<1x16x256xf32>
    tpu.vector_store %arg8[%c0_16, %c0_17, %c0_18], %47 {strides = array<i32>} : memref<1x16x256xf32, #tpu.memory_space<vmem>>, vector<1x16x256xf32>,
    return
  }
  func.func @transform_0(%arg0: i32, %arg1: i32) -> (i32, i32, i32) {
    %c0_i32 = arith.constant 0 : i32
    %c0_i32_0 = arith.constant 0 : i32
    return %arg0, %c0_i32, %arg1 : i32, i32, i32
  }
  func.func @transform_1(%arg0: i32, %arg1: i32) -> (i32, i32) {
    %c0_i32 = arith.constant 0 : i32
    %c0_i32_0 = arith.constant 0 : i32
    %c0_i32_1 = arith.constant 0 : i32
    return %c0_i32, %c0_i32_0 : i32, i32
  }
  func.func @transform_2(%arg0: i32, %arg1: i32) -> (i32, i32) {
    %c0_i32 = arith.constant 0 : i32
    %c0_i32_0 = arith.constant 0 : i32
    %c0_i32_1 = arith.constant 0 : i32
    return %c0_i32, %c0_i32_0 : i32, i32
  }
  func.func @transform_3(%arg0: i32, %arg1: i32) -> (i32, i32) {
    %c0_i32 = arith.constant 0 : i32
    %c0_i32_0 = arith.constant 0 : i32
    %c0_i32_1 = arith.constant 0 : i32
    return %c0_i32, %c0_i32_0 : i32, i32
  }
  func.func @transform_4(%arg0: i32, %arg1: i32) -> (i32, i32) {
    %c0_i32 = arith.constant 0 : i32
    %c0_i32_0 = arith.constant 0 : i32
    %c0_i32_1 = arith.constant 0 : i32
    return %c0_i32, %c0_i32_0 : i32, i32
  }
  func.func @transform_5(%arg0: i32, %arg1: i32) -> (i32, i32) {
    %c0_i32 = arith.constant 0 : i32
    %c0_i32_0 = arith.constant 0 : i32
    %c0_i32_1 = arith.constant 0 : i32
    return %c0_i32, %c0_i32_0 : i32, i32
  }
  func.func @transform_6(%arg0: i32, %arg1: i32) -> (i32, i32, i32) {
    %c0_i32 = arith.constant 0 : i32
    %c0_i32_0 = arith.constant 0 : i32
    return %arg0, %c0_i32, %arg1 : i32, i32, i32
  }
}

</mosaic_0001>

<llo_original>
// kernel: tpu_custom_call.1
$region0: #{tpu_custom_call.1}
  #allocation0 [shape = 'u32[]', space=smem, size = 0x4, offset = 0x4, fixed_abs, tag = 'smem constant byte address 0x4 - core index']
  #allocation1 [shape = 'u32[144,128]{1,0:T(1,128)}', space=vmem, size = 0x12000, scoped, tag = 'internal scratch']
  %s0 = inlined_call_operand.hbm [shape: f32[2,16,256], index: 0, kind: input, shape index: {}]
  %s1 = inlined_call_operand.vmem [shape: f32[2,1], index: 1, kind: input, shape index: {}]
  %s2 = inlined_call_operand.vmem [shape: f32[2,1], index: 2, kind: input, shape index: {}]
  %s3 = inlined_call_operand.vmem [shape: f32[2,1], index: 3, kind: input, shape index: {}]
  %s4 = inlined_call_operand.vmem [shape: f32[16,2], index: 4, kind: input, shape index: {}]
  %s5 = inlined_call_operand.vmem [shape: f32[16,1], index: 5, kind: input, shape index: {}]
  %s6 = inlined_call_operand.hbm [shape: f32[2,16,256], index: 6, kind: output, shape index: {}]
  %s7 = sld [smem:[#allocation0]]
  $region61: #{tpu_custom_call.1} parent=0
    _
  %s9 = ssub.s32 1, %s7
  %s10 = scalar_select 0, %s9, %s7
  $region1: #{tpu_custom_call.1} parent=0
    #allocation2 [shape = 'u8[32768]{0}', space=vmem, size = 0x8000, scoped, tag = 'input window, operand 0']
    #allocation3 [shape = 's32[2]{0}', space=sflag, size = 0x8, scoped, tag = 'scoped memory for tpu_custom_call.1']
    #allocation4 [shape = 's32[2]{0}', space=sflag, size = 0x8, scoped, tag = 'scoped memory for tpu_custom_call.1']
    #allocation5 [shape = 'u8[32768]{0}', space=vmem, size = 0x8000, scoped, tag = 'output window, operand 0']
    %11 = vsyncpa [#allocation3], 0
    %s12 = scalar_lea.sflag [#allocation3], 1
    %13 = vsyncpa %s12, 0
    %14 = vsyncpa [#allocation4], 0
    %s15 = scalar_lea.sflag [#allocation4], 1
    %16 = vsyncpa %s15, 0
    loop: start=0, step=1, limit=4
    $region2: #{tpu_custom_call.1} parent=1 // loop_pre_header
      _
    $region3: #{tpu_custom_call.1} parent=1 // loop_header
      %s18 = sphi 0, %s22
      %p19 = scmp.ge.s32.totalorder %s18, 4
      %s25 = sphi 0, %s37
      %s26 = sphi 0, %s33
      %s27 = sphi 0, %s25
      %s28 = sphi 0, %s26
      %s29 = sphi 0, %s27
      %s30 = sphi 0, %s28
      %s42 = sphi 0, %s44
      %s45 = sphi 0, %s42
      %s46 = sphi 0, %s45
      %s62 = sphi 0, %s46
      %s66 = sphi 0, %s66
      %s68 = sphi 0, %s66
      %s69 = sphi 0, %s68
      %s83 = sphi 0, %s69
      %s87 = sphi 0, %s87
      %s89 = sphi 0, %s87
      %s90 = sphi 0, %s89
      %s104 = sphi 0, %s90
      %s108 = sphi 0, %s108
      %s110 = sphi 0, %s108
      %s111 = sphi 0, %s110
      %s125 = sphi 0, %s111
      %s129 = sphi 0, %s129
      %s131 = sphi 0, %s129
      %s132 = sphi 0, %s131
      %s146 = sphi 0, %s132
      %s150 = sphi 0, %s150
      %s152 = sphi 0, %s150
      %s153 = sphi 0, %s152
      %s167 = sphi 0, %s153
      %s175 = sphi 0, %s177
      %s178 = sphi 0, %s175
      %s179 = sphi 0, %s178
      %s195 = sphi 0, %s179
    $region4: #{tpu_custom_call.1} parent=1 // loop_header_branch
      %21 = sbr.rel (%p19) target = $region8
    $region5: #{tpu_custom_call.1} parent=1 // loop_body
      %s23 = ssub.s32 %s18, 1
      %s24 = ssub.s32 %s18, 2
      %s31 = sadd.s32 1, %s26
      %p32 = scmp.ge.s32.totalorder %s31, 1
      %s33 = scalar_select %p32, 0, %s31
      %s34 = sadd.s32 1, %s25
      %s35 = scalar_select %p32, %s34, %s25
      %p36 = scmp.ge.s32.totalorder %s35, 2
      %s37 = scalar_select %p36, 0, %s35
      %s38 = ssub.s32 %s25, %s37
      %s39 = ssub.s32 %s26, %s33
      %s40 = sor.u32 %s38, %s39
      %p41 = scmp.eq.s32.totalorder %s40, 0
      %s43 = sadd.s32 %s42, 1
      %s44 = scalar_select %p41, %s42, %s43
      %p47 = pneg %p41
      %p48 = scmp.eq.s32.totalorder %s18, 1
      %p49 = por %p47, %p48
      %p50 = scmp.ne.s32.totalorder %s42, %s45
      %p51 = scmp.eq.s32.totalorder %s18, 0
      %p52 = por %p50, %p51
      %p53 = scmp.ne.s32.totalorder %s42, %s45
      %p54 = scmp.eq.s32.totalorder %s23, 1
      %p55 = por %p53, %p54
      %p56 = scmp.ne.s32.totalorder %s45, %s46
      %p57 = scmp.eq.s32.totalorder %s23, 0
      %p58 = por %p56, %p57
      %p59 = scmp.ne.s32.totalorder %s45, %s46
      %p60 = scmp.eq.s32.totalorder %s24, 1
      %p61 = por %p59, %p60
      %p63 = scmp.ne.s32.totalorder %s46, %s62
      %p64 = scmp.eq.s32.totalorder %s24, 0
      %p65 = por %p63, %p64
      %s67 = sadd.s32 %s66, 1
      %p70 = scmp.eq.s32.totalorder %s18, 1
      %p71 = scmp.ne.s32.totalorder %s66, %s68
      %p72 = scmp.eq.s32.totalorder %s18, 0
      %p73 = por %p71, %p72
      %p74 = scmp.ne.s32.totalorder %s66, %s68
      %p75 = scmp.eq.s32.totalorder %s23, 1
      %p76 = por %p74, %p75
      %p77 = scmp.ne.s32.totalorder %s68, %s69
      %p78 = scmp.eq.s32.totalorder %s23, 0
      %p79 = por %p77, %p78
      %p80 = scmp.ne.s32.totalorder %s68, %s69
      %p81 = scmp.eq.s32.totalorder %s24, 1
      %p82 = por %p80, %p81
      %p84 = scmp.ne.s32.totalorder %s69, %s83
      %p85 = scmp.eq.s32.totalorder %s24, 0
      %p86 = por %p84, %p85
      %s88 = sadd.s32 %s87, 1
      %p91 = scmp.eq.s32.totalorder %s18, 1
      %p92 = scmp.ne.s32.totalorder %s87, %s89
      %p93 = scmp.eq.s32.totalorder %s18, 0
      %p94 = por %p92, %p93
      %p95 = scmp.ne.s32.totalorder %s87, %s89
      %p96 = scmp.eq.s32.totalorder %s23, 1
      %p97 = por %p95, %p96
      %p98 = scmp.ne.s32.totalorder %s89, %s90
      %p99 = scmp.eq.s32.totalorder %s23, 0
      %p100 = por %p98, %p99
      %p101 = scmp.ne.s32.totalorder %s89, %s90
      %p102 = scmp.eq.s32.totalorder %s24, 1
      %p103 = por %p101, %p102
      %p105 = scmp.ne.s32.totalorder %s90, %s104
      %p106 = scmp.eq.s32.totalorder %s24, 0
      %p107 = por %p105, %p106
      %s109 = sadd.s32 %s108, 1
      %p112 = scmp.eq.s32.totalorder %s18, 1
      %p113 = scmp.ne.s32.totalorder %s108, %s110
      %p114 = scmp.eq.s32.totalorder %s18, 0
      %p115 = por %p113, %p114
      %p116 = scmp.ne.s32.totalorder %s108, %s110
      %p117 = scmp.eq.s32.totalorder %s23, 1
      %p118 = por %p116, %p117
      %p119 = scmp.ne.s32.totalorder %s110, %s111
      %p120 = scmp.eq.s32.totalorder %s23, 0
      %p121 = por %p119, %p120
      %p122 = scmp.ne.s32.totalorder %s110, %s111
      %p123 = scmp.eq.s32.totalorder %s24, 1
      %p124 = por %p122, %p123
      %p126 = scmp.ne.s32.totalorder %s111, %s125
      %p127 = scmp.eq.s32.totalorder %s24, 0
      %p128 = por %p126, %p127
      %s130 = sadd.s32 %s129, 1
      %p133 = scmp.eq.s32.totalorder %s18, 1
      %p134 = scmp.ne.s32.totalorder %s129, %s131
      %p135 = scmp.eq.s32.totalorder %s18, 0
      %p136 = por %p134, %p135
      %p137 = scmp.ne.s32.totalorder %s129, %s131
      %p138 = scmp.eq.s32.totalorder %s23, 1
      %p139 = por %p137, %p138
      %p140 = scmp.ne.s32.totalorder %s131, %s132
      %p141 = scmp.eq.s32.totalorder %s23, 0
      %p142 = por %p140, %p141
      %p143 = scmp.ne.s32.totalorder %s131, %s132
      %p144 = scmp.eq.s32.totalorder %s24, 1
      %p145 = por %p143, %p144
      %p147 = scmp.ne.s32.totalorder %s132, %s146
      %p148 = scmp.eq.s32.totalorder %s24, 0
      %p149 = por %p147, %p148
      %s151 = sadd.s32 %s150, 1
      %p154 = scmp.eq.s32.totalorder %s18, 1
      %p155 = scmp.ne.s32.totalorder %s150, %s152
      %p156 = scmp.eq.s32.totalorder %s18, 0
      %p157 = por %p155, %p156
      %p158 = scmp.ne.s32.totalorder %s150, %s152
      %p159 = scmp.eq.s32.totalorder %s23, 1
      %p160 = por %p158, %p159
      %p161 = scmp.ne.s32.totalorder %s152, %s153
      %p162 = scmp.eq.s32.totalorder %s23, 0
      %p163 = por %p161, %p162
      %p164 = scmp.ne.s32.totalorder %s152, %s153
      %p165 = scmp.eq.s32.totalorder %s24, 1
      %p166 = por %p164, %p165
      %p168 = scmp.ne.s32.totalorder %s153, %s167
      %p169 = scmp.eq.s32.totalorder %s24, 0
      %p170 = por %p168, %p169
      %s171 = ssub.s32 %s25, %s37
      %s172 = ssub.s32 %s26, %s33
      %s173 = sor.u32 %s171, %s172
      %p174 = scmp.eq.s32.totalorder %s173, 0
      %s176 = sadd.s32 %s175, 1
      %s177 = scalar_select %p174, %s175, %s176
      %p180 = pneg %p174
      %p181 = scmp.eq.s32.totalorder %s18, 1
      %p182 = por %p180, %p181
      %p183 = scmp.ne.s32.totalorder %s175, %s178
      %p184 = scmp.eq.s32.totalorder %s18, 0
      %p185 = por %p183, %p184
      %p186 = scmp.ne.s32.totalorder %s175, %s178
      %p187 = scmp.eq.s32.totalorder %s23, 1
      %p188 = por %p186, %p187
      %p189 = scmp.ne.s32.totalorder %s178, %s179
      %p190 = scmp.eq.s32.totalorder %s23, 0
      %p191 = por %p189, %p190
      %p192 = scmp.ne.s32.totalorder %s178, %s179
      %p193 = scmp.eq.s32.totalorder %s24, 1
      %p194 = por %p192, %p193
      %p196 = scmp.ne.s32.totalorder %s179, %s195
      %p197 = scmp.eq.s32.totalorder %s24, 0
      %p198 = por %p196, %p197
      %p199 = scmp.le.s32.totalorder 1, %s18
      %p200 = scmp.lt.s32.totalorder %s18, 3
      %p201 = pnand %p199, %p200
      %p202 = pneg %p201
      // Predicated region
      $region9: #{tpu_custom_call.1} parent=5 // pred_check
        _
      $region10: #{tpu_custom_call.1} parent=5 // pred_check_branch
        %204 = sbr.rel (%p201) target = $region12
      $region11: #{tpu_custom_call.1} parent=5 // pred_region
        %s205 = ssub.s32 %s18, 1
        // Predicated region
        $region13: #{tpu_custom_call.1} parent=11 // pred_check
          %p206 = pneg %p79
        $region14: #{tpu_custom_call.1} parent=11 // pred_check_branch
          %208 = sbr.rel (%p206) target = $region16
        $region15: #{tpu_custom_call.1} parent=11 // pred_region
          _
        $region16: #{tpu_custom_call.1} parent=11 // pred_fallthru
          _
        // Predicated region
        $region17: #{tpu_custom_call.1} parent=11 // pred_check
          %p209 = pneg %p100
        $region18: #{tpu_custom_call.1} parent=11 // pred_check_branch
          %211 = sbr.rel (%p209) target = $region20
        $region19: #{tpu_custom_call.1} parent=11 // pred_region
          _
        $region20: #{tpu_custom_call.1} parent=11 // pred_fallthru
          _
        // Predicated region
        $region21: #{tpu_custom_call.1} parent=11 // pred_check
          %p212 = pneg %p121
        $region22: #{tpu_custom_call.1} parent=11 // pred_check_branch
          %214 = sbr.rel (%p212) target = $region24
        $region23: #{tpu_custom_call.1} parent=11 // pred_region
          _
        $region24: #{tpu_custom_call.1} parent=11 // pred_fallthru
          _
        // Predicated region
        $region25: #{tpu_custom_call.1} parent=11 // pred_check
          %p215 = pneg %p142
        $region26: #{tpu_custom_call.1} parent=11 // pred_check_branch
          %217 = sbr.rel (%p215) target = $region28
        $region27: #{tpu_custom_call.1} parent=11 // pred_region
          _
        $region28: #{tpu_custom_call.1} parent=11 // pred_fallthru
          _
        // Predicated region
        $region29: #{tpu_custom_call.1} parent=11 // pred_check
          %p218 = pneg %p163
        $region30: #{tpu_custom_call.1} parent=11 // pred_check_branch
          %220 = sbr.rel (%p218) target = $region32
        $region31: #{tpu_custom_call.1} parent=11 // pred_region
          _
        $region32: #{tpu_custom_call.1} parent=11 // pred_fallthru
          _
      $region12: #{tpu_custom_call.1} parent=5 // pred_fallthru
        _
      %p221 = scmp.lt.s32.totalorder %s18, 2
      // Predicated region
      $region33: #{tpu_custom_call.1} parent=5 // pred_check
        %p222 = pneg %p221
      $region34: #{tpu_custom_call.1} parent=5 // pred_check_branch
        %224 = sbr.rel (%p222) target = $region36
      $region35: #{tpu_custom_call.1} parent=5 // pred_region
        // Predicated region
        $region37: #{tpu_custom_call.1} parent=35 // pred_check
          %p225 = pneg %p52
        $region38: #{tpu_custom_call.1} parent=35 // pred_check_branch
          %227 = sbr.rel (%p225) target = $region40
        $region39: #{tpu_custom_call.1} parent=35 // pred_region
          %s228 = sand.u32 %s42, 1
          %s229 = scalar_lea.sflag [#allocation3], %s228
          %s230 = sand.u32 %s42, 1
          %s231 = smul.addr %s230, 32
          %s232 = scalar_lea.vmem [#allocation2], %s231
          %s233 = smul.u32 2, %s26
          %s235 = ssub.s32 512, 512
          %236 = vsyncadd %s229, %s235
          %s237 = smul.addr %s25, 4
          %s238 = sadd.s32 %s233, %s237
          %s239 = smul.addr %s238, 128
          %s240 = scalar_lea.hbm %s0, %s239
          %s241 = sshll.u32 %s232, 4
          %s242 = int_to_ptr.vmem [resolvable:$true] %s241
          %247 = dma.hbm_to_vmem [thread:$0]  %s240, 512, %s242, %s229, 256, 256, 16
        $region40: #{tpu_custom_call.1} parent=35 // pred_fallthru
          _
      $region36: #{tpu_custom_call.1} parent=5 // pred_fallthru
        _
      %p248 = scmp.le.s32.totalorder 1, %s18
      %p249 = scmp.lt.s32.totalorder %s18, 3
      %p250 = pnand %p248, %p249
      %p251 = pneg %p250
      // Predicated region
      $region41: #{tpu_custom_call.1} parent=5 // pred_check
        _
      $region42: #{tpu_custom_call.1} parent=5 // pred_check_branch
        %253 = sbr.rel (%p250) target = $region44
      $region43: #{tpu_custom_call.1} parent=5 // pred_region
        %s254 = ssub.s32 %s18, 1
        %s255 = sand.u32 %s45, 1
        %s256 = scalar_lea.sflag [#allocation3], %s255
        %s257 = sand.u32 %s45, 1
        %s258 = smul.addr %s257, 32
        %s259 = scalar_lea.vmem [#allocation2], %s258
        // Predicated region
        $region45: #{tpu_custom_call.1} parent=43 // pred_check
          %p260 = pneg %p58
        $region46: #{tpu_custom_call.1} parent=43 // pred_check_branch
          %262 = sbr.rel (%p260) target = $region48
        $region47: #{tpu_custom_call.1} parent=43 // pred_region
          %263 = dma.done %s256, 512
        $region48: #{tpu_custom_call.1} parent=43 // pred_fallthru
          _
        %s264 = sand.u32 %s45, 1
        %s265 = scalar_lea.sflag [#allocation3], %s264
        %s266 = sand.u32 %s45, 1
        %s267 = smul.addr %s266, 32
        %s268 = scalar_lea.vmem [#allocation2], %s267
        %p269 = pneg %p58
        %p270 = pneg %p55
        %p271 = pneg %p79
        %p272 = pneg %p76
        %p273 = pneg %p100
        %p274 = pneg %p97
        %p275 = pneg %p121
        %p276 = pneg %p118
        %p277 = pneg %p142
        %p278 = pneg %p139
        %p279 = pneg %p163
        %p280 = pneg %p160
        %p281 = pneg %p191
        %p282 = pneg %p188
        %s283 = sand.u32 %s178, 1
        %s284 = scalar_lea.sflag [#allocation4], %s283
        %s285 = sand.u32 %s178, 1
        %s286 = smul.addr %s285, 32
        %s287 = scalar_lea.vmem [#allocation5], %s286
        %s288 = smul.u32 2, %s28
        %s289 = smul.u32 2, %s28
        %v290 = vld [vmem:[%s259] sm:$0xff]
        %v291 = vld [vmem:[%s259 + $0x8] sm:$0xff]
        %v292 = vld [vmem:[%s259 + $0x10] sm:$0xff]
        %v293 = vld [vmem:[%s259 + $0x18] sm:$0xff]
        %v294 = vadd.f32 %v290, %v292
        %v295 = vrot.slane %v294, 4
        %v296 = vadd.f32 %v294, %v295
        %v297 = vrot.slane %v296, 2
        %v298 = vadd.f32 %v296, %v297
        %v299 = vrot.slane %v298, 1
        %v300 = vadd.f32 %v298, %v299
        %v301 = vadd.f32 %v291, %v293
        %v302 = vrot.slane %v301, 4
        %v303 = vadd.f32 %v301, %v302
        %v304 = vrot.slane %v303, 2
        %v305 = vadd.f32 %v303, %v304
        %v306 = vrot.slane %v305, 1
        %v307 = vadd.f32 %v305, %v306
        %v308 = vrcp.pop 16.0
        %v309 = vmul.f32 %v300, %v308
        %v310 = vmul.f32 %v307, %v308
        %v311 = vmax.f32 %v290, %v292
        %v312 = vrot.slane %v311, 4
        %v313 = vmax.f32 %v311, %v312
        %v314 = vrot.slane %v313, 2
        %v315 = vmax.f32 %v313, %v314
        %v316 = vrot.slane %v315, 1
        %v317 = vmax.f32 %v315, %v316
        %v318 = vmax.f32 %v291, %v293
        %v319 = vrot.slane %v318, 4
        %v320 = vmax.f32 %v318, %v319
        %v321 = vrot.slane %v320, 2
        %v322 = vmax.f32 %v320, %v321
        %v323 = vrot.slane %v322, 1
        %v324 = vmax.f32 %v322, %v323
        %v325 = vld [vmem:[%s1] sm:$0x3]
        %v326 = vld [vmem:[%s2] sm:$0x3]
        %v327 = vld [vmem:[%s3] sm:$0x3]
        %329 = vset.pattern.permute.xlu0 0
        %330 = vperm.xlu0 %329, %v325
        %v331 = vpop.permute.xlu0 %330
        %v333 = vmul.f32 %v331, %v309
        %v334 = vmul.f32 %v331, %v310
        %336 = vset.pattern.permute.xlu0 0
        %337 = vperm.xlu0 %336, %v326
        %v338 = vpop.permute.xlu0 %337
        %v340 = vmul.f32 %v338, %v317
        %v341 = vmul.f32 %v338, %v324
        %v342 = vadd.f32 %v333, %v340
        %v343 = vadd.f32 %v334, %v341
        %345 = vset.pattern.permute.xlu0 0
        %346 = vperm.xlu0 %345, %v327
        %v347 = vpop.permute.xlu0 %346
        %v349 = vadd.f32 %v342, %v347
        %v350 = vadd.f32 %v343, %v347
        %v351 = vmax.f32 %v349, 0.0
        %v352 = vmax.f32 %v350, 0.0
        %v353 = vld [vmem:[%s4] sm:$0xff]
        %v354 = vld [vmem:[%s4 + $0x8] sm:$0xff]
        %v355 = vld [vmem:[%s5] sm:$0xff]
        %v356 = vld [vmem:[%s5 + $0x8] sm:$0xff]
        %358 = vset.pattern.permute.xlu0 0
        %359 = vperm.xlu0 %358, %v353
        %v360 = vpop.permute.xlu0 %359
        %363 = vset.pattern.permute.xlu0 0
        %364 = vperm.xlu0 %363, %v354
        %v365 = vpop.permute.xlu0 %364
        %v367 = vlaneseq
        %v368 = vshrl.u32 %v367, 7
        %v369 = vsub.s32 0, %v368
        %v370 = vrot.slane %v351, %v369
        %v371 = vlaneseq
        %v372 = vshrl.u32 %v371, 7
        %v373 = vsub.s32 0, %v372
        %v374 = vrot.slane %v352, %v373
        %v375 = vmul.f32 %v360, %v370
        %v376 = vmul.f32 %v360, %v374
        %v377 = vmul.f32 %v365, %v370
        %v378 = vmul.f32 %v365, %v374
        %380 = vset.pattern.permute.xlu0 0
        %381 = vperm.xlu0 %380, %v355
        %v382 = vpop.permute.xlu0 %381
        %385 = vset.pattern.permute.xlu0 0
        %386 = vperm.xlu0 %385, %v356
        %v387 = vpop.permute.xlu0 %386
        %v389 = vadd.f32 %v382, %v375
        %v390 = vadd.f32 %v382, %v376
        %v391 = vadd.f32 %v387, %v377
        %v392 = vadd.f32 %v387, %v378
        %393 = vset.pattern.permute.xlu0 1
        %394 = vperm.xlu0 %393, %v353
        %v395 = vpop.permute.xlu0 %394
        %397 = vset.pattern.permute.xlu0 1
        %398 = vperm.xlu0 %397, %v354
        %v399 = vpop.permute.xlu0 %398
        %v401 = vlaneseq
        %v402 = vshrl.u32 %v401, 7
        %v403 = vsub.s32 1, %v402
        %v404 = vrot.slane %v351, %v403
        %v405 = vlaneseq
        %v406 = vshrl.u32 %v405, 7
        %v407 = vsub.s32 1, %v406
        %v408 = vrot.slane %v352, %v407
        %v409 = vmul.f32 %v395, %v404
        %v410 = vmul.f32 %v395, %v408
        %v411 = vmul.f32 %v399, %v404
        %v412 = vmul.f32 %v399, %v408
        %v413 = vadd.f32 %v389, %v409
        %v414 = vadd.f32 %v390, %v410
        %v415 = vadd.f32 %v391, %v411
        %v416 = vadd.f32 %v392, %v412
        %v417 = vxor.u32 %v413, 2147483648
        %v418 = vxor.u32 %v414, 2147483648
        %v419 = vxor.u32 %v415, 2147483648
        %v420 = vxor.u32 %v416, 2147483648
        %v421 = vmul.f32 %v417, 1.442695
        %v422 = vpow.pop %v421
        %v423 = vmul.f32 %v418, 1.442695
        %v424 = vpow.pop %v423
        %v425 = vmul.f32 %v419, 1.442695
        %v426 = vpow.pop %v425
        %v427 = vmul.f32 %v420, 1.442695
        %v428 = vpow.pop %v427
        %v429 = vadd.f32 %v422, 1.0
        %v430 = vadd.f32 %v424, 1.0
        %v431 = vadd.f32 %v426, 1.0
        %v432 = vadd.f32 %v428, 1.0
        %v433 = vrcp.pop %v429
        %v434 = vmul.f32 1.0, %v433
        %v435 = vrcp.pop %v430
        %v436 = vmul.f32 1.0, %v435
        %v437 = vrcp.pop %v431
        %v438 = vmul.f32 1.0, %v437
        %v439 = vrcp.pop %v432
        %v440 = vmul.f32 1.0, %v439
        %v441 = vmul.f32 %v290, %v434
        %v442 = vmul.f32 %v291, %v436
        %v443 = vmul.f32 %v292, %v438
        %v444 = vmul.f32 %v293, %v440
        %445 = vst [vmem:[%s287] sm:$0xff] %v441
        %446 = vst [vmem:[%s287 + $0x8] sm:$0xff] %v442
        %447 = vst [vmem:[%s287 + $0x10] sm:$0xff] %v443
        %448 = vst [vmem:[%s287 + $0x18] sm:$0xff] %v444
        %s449 = sand.u32 %s178, 1
        %s450 = scalar_lea.sflag [#allocation4], %s449
        %s451 = sand.u32 %s178, 1
        %s452 = smul.addr %s451, 32
        %s453 = scalar_lea.vmem [#allocation5], %s452
        // Predicated region
        $region49: #{tpu_custom_call.1} parent=43 // pred_check
          %p454 = pneg %p188
        $region50: #{tpu_custom_call.1} parent=43 // pred_check_branch
          %456 = sbr.rel (%p454) target = $region52
        $region51: #{tpu_custom_call.1} parent=43 // pred_region
          %s457 = smul.u32 2, %s28
          %s459 = ssub.s32 512, 512
          %460 = vsyncadd %s450, %s459
          %s461 = smul.addr %s27, 4
          %s462 = sadd.s32 %s457, %s461
          %s463 = smul.addr %s462, 128
          %s464 = scalar_lea.hbm %s6, %s463
          %s465 = sshll.u32 %s453, 4
          %s466 = int_to_ptr.vmem [resolvable:$true] %s465
          %471 = dma.vmem_to_hbm [thread:$0]  %s466, 512, %s464, %s450, 256, 256, 16
        $region52: #{tpu_custom_call.1} parent=43 // pred_fallthru
          _
      $region44: #{tpu_custom_call.1} parent=5 // pred_fallthru
        _
      %p472 = scmp.le.s32.totalorder 2, %s18
      // Predicated region
      $region53: #{tpu_custom_call.1} parent=5 // pred_check
        %p473 = pneg %p472
      $region54: #{tpu_custom_call.1} parent=5 // pred_check_branch
        %475 = sbr.rel (%p473) target = $region56
      $region55: #{tpu_custom_call.1} parent=5 // pred_region
        %s476 = ssub.s32 %s18, 2
        // Predicated region
        $region57: #{tpu_custom_call.1} parent=55 // pred_check
          %p477 = pneg %p194
        $region58: #{tpu_custom_call.1} parent=55 // pred_check_branch
          %479 = sbr.rel (%p477) target = $region60
        $region59: #{tpu_custom_call.1} parent=55 // pred_region
          %s480 = sand.u32 %s179, 1
          %s481 = scalar_lea.sflag [#allocation4], %s480
          %s482 = sand.u32 %s179, 1
          %s483 = smul.addr %s482, 32
          %s484 = scalar_lea.vmem [#allocation5], %s483
          %485 = dma.done %s481, 512
        $region60: #{tpu_custom_call.1} parent=55 // pred_fallthru
          _
      $region56: #{tpu_custom_call.1} parent=5 // pred_fallthru
        _
    $region6: #{tpu_custom_call.1} parent=1 // loop_footer
      %s22 = sadd.s32 1, %s18
    $region7: #{tpu_custom_call.1} parent=1 // loop_footer_branch
      %17 = sbr.rel target = $region3
    $region8: #{tpu_custom_call.1} parent=1 // loop_exit
      _
    %486 = vsyncpa [#allocation3], 1
    %s487 = scalar_lea.sflag [#allocation3], 1
    %488 = vsyncpa %s487, 1
    %489 = vsyncpa [#allocation4], 1
    %s490 = scalar_lea.sflag [#allocation4], 1
    %491 = vsyncpa %s490, 1

</llo_original>
